<compile_context>
chip_gen: v5e
topology: v5e:2x2
jax: 0.10.0
libtpu: 0.0.40
codegen_flags: <defaults>
</compile_context>

<pallas_src>
import functools

import jax
import jax.numpy as jnp
from jax.experimental import pallas as pl
from jax.experimental.pallas import tpu as pltpu

_LANE = 128
_SUBLANE = 8
_NEG_BIG = -1.0e30  # padding bias for the output layer: exp() underflows to 0


def _round_up(n, m):
    return -(-n // m) * m


def _mlp_kernel(num_layers, x_ref, w_ref, b_ref, o_ref):
    """Fused MLP kernel.

    x_ref: (block_batch, P)   padded input activations (zeros in pad cols)
    w_ref: (L, P, P)          zero-padded weight slab, layer l at w_ref[l]
    b_ref: (L, 1, P)          padded bias slab (output-layer pad = -1e30)
    o_ref: (block_batch, P)   padded log-probabilities
    """
    h = x_ref[...]

    # Input layer + hidden layers: Linear -> ReLU (-> Dropout, identity in eval).
    for li in range(num_layers - 1):
        h = jnp.dot(h, w_ref[li], preferred_element_type=jnp.float32) + b_ref[li]
        h = jnp.maximum(h, 0.0)
        # dropout(p) in eval mode == identity

    # Output layer.
    logits = (
        jnp.dot(h, w_ref[num_layers - 1], preferred_element_type=jnp.float32)
        + b_ref[num_layers - 1]
    )

    # log_softmax along dim=1 (feature/lane axis). Padded lanes carry -1e30,
    # so their exp() underflows to exactly 0 and the reduction is exact.
    m = jnp.max(logits, axis=-1, keepdims=True)
    z = logits - m
    lse = jnp.log(jnp.sum(jnp.exp(z), axis=-1, keepdims=True))
    o_ref[...] = (z - lse).astype(o_ref.dtype)


def pack_params(params):
    """Pack per-layer (W, b) into two padded slabs (done once, outside forward).

    params: list of (W, b) with W: (in, out), b: (out,). params[0] is the input
            layer, params[-1] the output layer.
    Returns:
      w_slab: (L, P, P) float32, zero padded.
      b_slab: (L, 1, P) float32, zero padded; output layer padded with -1e30.
    """
    num_layers = len(params)
    max_feat = max(max(w.shape[0], w.shape[1]) for w, _ in params)
    pad = _round_up(max(max_feat, _LANE), _LANE)

    w_blocks, b_blocks = [], []
    for i, (w, b) in enumerate(params):
        wp = jnp.zeros((pad, pad), jnp.float32)
        wp = wp.at[: w.shape[0], : w.shape[1]].set(w.astype(jnp.float32))
        w_blocks.append(wp)

        fill = _NEG_BIG if i == num_layers - 1 else 0.0
        bp = jnp.full((1, pad), fill, jnp.float32)
        bp = bp.at[0, : b.shape[-1]].set(b.reshape(-1).astype(jnp.float32))
        b_blocks.append(bp)

    return jnp.stack(w_blocks), jnp.stack(b_blocks)


def classifier_forward(x, w_slab, b_slab, output_size, *, max_block_batch=512):
    """Run the fused Pallas MLP kernel.

    Args:
      x: (batch, input_size) float32.
      w_slab: (L, P, P) packed/padded weights from `pack_params`.
      b_slab: (L, 1, P) packed/padded biases from `pack_params`.
      output_size: number of real output classes.
      max_block_batch: max batch rows per grid step (sublane-aligned).
    Returns:
      (batch, output_size) float32 log-probabilities.
    """
    batch, in_size = x.shape
    num_layers, pad, _ = w_slab.shape

    # Choose a batch tile: whole batch if small, else a fixed lane/sublane
    # friendly block; pad the batch to a multiple of the tile.
    block_batch = min(_round_up(batch, _SUBLANE), max_block_batch)
    batch_pad = _round_up(batch, block_batch)
    grid = (batch_pad // block_batch,)

    # Pad activations to a lane-dense (batch_pad, P) block; padded columns are
    # zero and meet zero weight rows, so they contribute nothing.
    x_pad = jnp.zeros((batch_pad, pad), jnp.float32)
    x_pad = x_pad.at[:batch, :in_size].set(x.astype(jnp.float32))

    out_pad = pl.pallas_call(
        functools.partial(_mlp_kernel, num_layers),
        out_shape=jax.ShapeDtypeStruct((batch_pad, pad), jnp.float32),
        grid_spec=pltpu.PrefetchScalarGridSpec(
            num_scalar_prefetch=0,
            grid=grid,
            in_specs=[
                pl.BlockSpec((block_batch, pad), lambda i: (i, 0)),
                # Constant block index -> weight/bias slabs stay resident in
                # VMEM across grid steps (no re-DMA).
                pl.BlockSpec((num_layers, pad, pad), lambda i: (0, 0, 0)),
                pl.BlockSpec((num_layers, 1, pad), lambda i: (0, 0, 0)),
            ],
            out_specs=pl.BlockSpec((block_batch, pad), lambda i: (i, 0)),
        ),
        compiler_params=pltpu.CompilerParams(
            dimension_semantics=("parallel",),
        ),
    )(x_pad, w_slab, b_slab)

    return out_pad[:batch, :output_size]


def init_params(key, input_size, output_size, hidden_layers):
    """Deterministic param init (uniform +-1/sqrt(fan_in), like nn.Linear)."""
    sizes = [input_size] + list(hidden_layers) + [output_size]
    params = []
    for i in range(len(sizes) - 1):
        fan_in, fan_out = sizes[i], sizes[i + 1]
        key, kw, kb = jax.random.split(key, 3)
        bound = 1.0 / jnp.sqrt(jnp.float32(fan_in))
        w = jax.random.uniform(kw, (fan_in, fan_out), jnp.float32, -bound, bound)
        b = jax.random.uniform(kb, (fan_out,), jnp.float32, -bound, bound)
        params.append((w, b))
    return params


def reference_forward(x, params):
    """Pure-JAX reference for sanity checking."""
    h = jnp.maximum(x @ params[0][0] + params[0][1], 0.0)
    for w, b in params[1:-1]:
        h = jnp.maximum(h @ w + b, 0.0)
    logits = h @ params[-1][0] + params[-1][1]
    return jax.nn.log_softmax(logits, axis=1)


if __name__ == "__main__":
    # Small shapes consistent with the module: batch=8, input=32,
    # hidden_layers=[64, 48], output=10.
    input_size = 32
    output_size = 10
    hidden_layers = [64, 48]
    batch = 8

    key = jax.random.PRNGKey(0)
    key, kx = jax.random.split(key)
    x = jax.random.normal(kx, (batch, input_size), jnp.float32)
    params = init_params(key, input_size, output_size, hidden_layers)

    # Pack parameters once (layout transformation, analogous to weight loading).
    w_slab, b_slab = pack_params(params)
    w_slab = jax.block_until_ready(w_slab)
    b_slab = jax.block_until_ready(b_slab)

    out = classifier_forward(x, w_slab, b_slab, output_size)
    out = jax.block_until_ready(out)

    ref = reference_forward(x, params)
    assert out.shape == (batch, output_size)
    assert jnp.allclose(out, ref, atol=1e-5, rtol=1e-5), "mismatch vs reference"

    print("KERNEL_OK")
</pallas_src>

<mosaic_0001>
module attributes {stable_mosaic.version = 11 : i64} {
  func.func @_mlp_kernel(%arg0: i32, %arg1: memref<8x128xf32, #tpu.memory_space<vmem>>, %arg2: memref<3x128x128xf32, #tpu.memory_space<vmem>>, %arg3: memref<3x1x128xf32, #tpu.memory_space<vmem>>, %arg4: memref<8x128xf32, #tpu.memory_space<vmem>>) attributes {dimension_semantics = [#tpu.dimension_semantics<parallel>], iteration_bounds = array<i64: 1>, scalar_prefetch = 0 : i64, scratch_operands = 0 : i64, tpu.core_type = #tpu.core_type<tc>, window_params = [{transform_indices = @transform_0, window_bounds = array<i64: 8, 128>}, {pipeline_mode = #tpu.pipeline_mode<synchronous>, transform_indices = @transform_1, window_bounds = array<i64: 3, 128, 128>}, {pipeline_mode = #tpu.pipeline_mode<synchronous>, transform_indices = @transform_2, window_bounds = array<i64: 3, 1, 128>}, {transform_indices = @transform_3, window_bounds = array<i64: 8, 128>}]} {
    %c0 = arith.constant 0 : index
    %c0_0 = arith.constant 0 : index
    %0 = vector.load %arg1[%c0, %c0_0] : memref<8x128xf32, #tpu.memory_space<vmem>>, vector<8x128xf32>
    %c0_1 = arith.constant 0 : index
    %c0_2 = arith.constant 0 : index
    %c0_3 = arith.constant 0 : index
    %1 = vector.load %arg2[%c0_1, %c0_2, %c0_3] : memref<3x128x128xf32, #tpu.memory_space<vmem>>, vector<1x128x128xf32>
    %2 = vector.shape_cast %1 : vector<1x128x128xf32> to vector<128x128xf32>
    %cst = arith.constant dense<0.000000e+00> : vector<8x128xf32>
    %3 = tpu.matmul %0, %2, %cst {dimension_numbers = #tpu.dot_dimension_numbers<[1], [0], [0], [1], [0, 0, 1, 1], [], []>} : vector<8x128xf32>, vector<128x128xf32>, vector<8x128xf32> -> vector<8x128xf32>
    %c0_4 = arith.constant 0 : index
    %c0_5 = arith.constant 0 : index
    %c0_6 = arith.constant 0 : index
    %4 = vector.load %arg3[%c0_4, %c0_5, %c0_6] : memref<3x1x128xf32, #tpu.memory_space<vmem>>, vector<1x1x128xf32>
    %5 = vector.shape_cast %4 : vector<1x1x128xf32> to vector<1x128xf32>
    %6 = vector.broadcast %5 : vector<1x128xf32> to vector<8x128xf32>
    %7 = arith.addf %3, %6 : vector<8x128xf32>
    %cst_7 = arith.constant 0.000000e+00 : f32
    %8 = vector.broadcast %cst_7 : f32 to vector<8x128xf32>
    %9 = arith.maximumf %7, %8 : vector<8x128xf32>
    %c1 = arith.constant 1 : index
    %c0_8 = arith.constant 0 : index
    %c0_9 = arith.constant 0 : index
    %10 = vector.load %arg2[%c1, %c0_8, %c0_9] : memref<3x128x128xf32, #tpu.memory_space<vmem>>, vector<1x128x128xf32>
    %11 = vector.shape_cast %10 : vector<1x128x128xf32> to vector<128x128xf32>
    %cst_10 = arith.constant dense<0.000000e+00> : vector<8x128xf32>
    %12 = tpu.matmul %9, %11, %cst_10 {dimension_numbers = #tpu.dot_dimension_numbers<[1], [0], [0], [1], [0, 0, 1, 1], [], []>} : vector<8x128xf32>, vector<128x128xf32>, vector<8x128xf32> -> vector<8x128xf32>
    %c1_11 = arith.constant 1 : index
    %c0_12 = arith.constant 0 : index
    %c0_13 = arith.constant 0 : index
    %13 = vector.load %arg3[%c1_11, %c0_12, %c0_13] : memref<3x1x128xf32, #tpu.memory_space<vmem>>, vector<1x1x128xf32>
    %14 = vector.shape_cast %13 : vector<1x1x128xf32> to vector<1x128xf32>
    %15 = vector.broadcast %14 : vector<1x128xf32> to vector<8x128xf32>
    %16 = arith.addf %12, %15 : vector<8x128xf32>
    %cst_14 = arith.constant 0.000000e+00 : f32
    %17 = vector.broadcast %cst_14 : f32 to vector<8x128xf32>
    %18 = arith.maximumf %16, %17 : vector<8x128xf32>
    %c2 = arith.constant 2 : index
    %c0_15 = arith.constant 0 : index
    %c0_16 = arith.constant 0 : index
    %19 = vector.load %arg2[%c2, %c0_15, %c0_16] : memref<3x128x128xf32, #tpu.memory_space<vmem>>, vector<1x128x128xf32>
    %20 = vector.shape_cast %19 : vector<1x128x128xf32> to vector<128x128xf32>
    %cst_17 = arith.constant dense<0.000000e+00> : vector<8x128xf32>
    %21 = tpu.matmul %18, %20, %cst_17 {dimension_numbers = #tpu.dot_dimension_numbers<[1], [0], [0], [1], [0, 0, 1, 1], [], []>} : vector<8x128xf32>, vector<128x128xf32>, vector<8x128xf32> -> vector<8x128xf32>
    %c2_18 = arith.constant 2 : index
    %c0_19 = arith.constant 0 : index
    %c0_20 = arith.constant 0 : index
    %22 = vector.load %arg3[%c2_18, %c0_19, %c0_20] : memref<3x1x128xf32, #tpu.memory_space<vmem>>, vector<1x1x128xf32>
    %23 = vector.shape_cast %22 : vector<1x1x128xf32> to vector<1x128xf32>
    %24 = vector.broadcast %23 : vector<1x128xf32> to vector<8x128xf32>
    %25 = arith.addf %21, %24 : vector<8x128xf32>
    %cst_21 = arith.constant dense<0xFF800000> : vector<8xf32>
    %26 = vector.multi_reduction <maximumf>, %25, %cst_21 [1] : vector<8x128xf32> to vector<8xf32>
    %27 = vector.shape_cast %26 : vector<8xf32> to vector<8x1xf32>
    %28 = vector.broadcast %27 : vector<8x1xf32> to vector<8x128xf32>
    %29 = arith.subf %25, %28 : vector<8x128xf32>
    %30 = math.exp %29 : vector<8x128xf32>
    %cst_22 = arith.constant dense<0.000000e+00> : vector<8xf32>
    %31 = vector.multi_reduction <add>, %30, %cst_22 [1] : vector<8x128xf32> to vector<8xf32>
    %32 = vector.shape_cast %31 : vector<8xf32> to vector<8x1xf32>
    %33 = math.log %32 : vector<8x1xf32>
    %34 = vector.broadcast %33 : vector<8x1xf32> to vector<8x128xf32>
    %35 = arith.subf %29, %34 : vector<8x128xf32>
    %c0_23 = arith.constant 0 : index
    %c0_24 = arith.constant 0 : index
    %36 = vector.load %arg4[%c0_23, %c0_24] : memref<8x128xf32, #tpu.memory_space<vmem>>, vector<8x128xf32>
    tpu.vector_store %arg4[%c0_23, %c0_24], %35 {strides = array<i32>} : memref<8x128xf32, #tpu.memory_space<vmem>>, vector<8x128xf32>,
    return
  }
  func.func @transform_0(%arg0: i32) -> (i32, i32) {
    %c0_i32 = arith.constant 0 : i32
    %c0_i32_0 = arith.constant 0 : i32
    return %arg0, %c0_i32 : i32, i32
  }
  func.func @transform_1(%arg0: i32) -> (i32, i32, i32) {
    %c0_i32 = arith.constant 0 : i32
    %c0_i32_0 = arith.constant 0 : i32
    %c0_i32_1 = arith.constant 0 : i32
    %c0_i32_2 = arith.constant 0 : i32
    return %c0_i32, %c0_i32_0, %c0_i32_1 : i32, i32, i32
  }
  func.func @transform_2(%arg0: i32) -> (i32, i32, i32) {
    %c0_i32 = arith.constant 0 : i32
    %c0_i32_0 = arith.constant 0 : i32
    %c0_i32_1 = arith.constant 0 : i32
    %c0_i32_2 = arith.constant 0 : i32
    return %c0_i32, %c0_i32_0, %c0_i32_1 : i32, i32, i32
  }
  func.func @transform_3(%arg0: i32) -> (i32, i32) {
    %c0_i32 = arith.constant 0 : i32
    %c0_i32_0 = arith.constant 0 : i32
    return %arg0, %c0_i32 : i32, i32
  }
}

</mosaic_0001>

<llo_original>
// kernel: tpu_custom_call.1
$region0: #{tpu_custom_call.1}
  #allocation0 [shape = 'u32[]', space=smem, size = 0x4, offset = 0x4, fixed_abs, tag = 'smem constant byte address 0x4 - core index']
  #allocation1 [shape = 'u32[72,128]{1,0:T(1,128)}', space=vmem, size = 0x9000, scoped, tag = 'internal scratch']
  %s0 = inlined_call_operand.hbm [shape: f32[8,128], index: 0, kind: input, shape index: {}]
  %s1 = inlined_call_operand.hbm [shape: f32[3,128,128], index: 1, kind: input, shape index: {}]
  %s2 = inlined_call_operand.hbm [shape: f32[3,1,128], index: 2, kind: input, shape index: {}]
  %s3 = inlined_call_operand.hbm [shape: f32[8,128], index: 3, kind: output, shape index: {}]
  %s4 = sld [smem:[#allocation0]]
  $region34: #{tpu_custom_call.1} parent=0
    _
  %s6 = ssub.s32 1, %s4
  %s7 = scalar_select 0, %s6, %s4
  $region1: #{tpu_custom_call.1} parent=0
    #allocation2 [shape = 'u8[4096]{0}', space=vmem, size = 0x1000, scoped, tag = 'input window, operand 0, single buffered']
    #allocation3 [shape = 's32[1]{0}', space=sflag, size = 0x4, scoped, tag = 'scoped memory for tpu_custom_call.1']
    #allocation4 [shape = 's32[1]{0}', space=sflag, size = 0x4, scoped, tag = 'scoped memory for tpu_custom_call.1']
    #allocation5 [shape = 'u8[196608]{0}', space=vmem, size = 0x30000, scoped, tag = 'input window, operand 1, single buffered']
    #allocation6 [shape = 's32[1]{0}', space=sflag, size = 0x4, scoped, tag = 'scoped memory for tpu_custom_call.1']
    #allocation7 [shape = 'u8[1536]{0}', space=vmem, size = 0x800, scoped, tag = 'input window, operand 2, single buffered']
    #allocation8 [shape = 'u8[4096]{0}', space=vmem, size = 0x1000, scoped, tag = 'output window, operand 0, single buffered']
    %8 = vsyncpa [#allocation3], 0
    %9 = vsyncpa [#allocation6], 0
    %10 = vsyncpa [#allocation4], 0
    // Predicated region
    $region2: #{tpu_custom_call.1} parent=1 // pred_check
      _
    $region3: #{tpu_custom_call.1} parent=1 // pred_check_branch
      %12 = sbr.rel (0) target = $region5
    $region4: #{tpu_custom_call.1} parent=1 // pred_region
      %14 = vsyncadd [#allocation3], 0
      %s16 = sshll.u32 %s0, 4
      %s17 = int_to_ptr.hbm [resolvable:$true] %s16
      %s18 = sshll.u32 [#allocation2], 4
      %s19 = int_to_ptr.vmem [resolvable:$true] %s18
      %21 = dma.hbm_to_vmem [thread:$0]  %s17, 128, %s19, [#allocation3]
    $region5: #{tpu_custom_call.1} parent=1 // pred_fallthru
      _
    // Predicated region
    $region6: #{tpu_custom_call.1} parent=1 // pred_check
      _
    $region7: #{tpu_custom_call.1} parent=1 // pred_check_branch
      %23 = sbr.rel (0) target = $region9
    $region8: #{tpu_custom_call.1} parent=1 // pred_region
      %25 = vsyncadd [#allocation6], 0
      %s26 = sshll.u32 %s1, 4
      %s27 = int_to_ptr.hbm [resolvable:$true] %s26
      %s28 = sshll.u32 [#allocation5], 4
      %s29 = int_to_ptr.vmem [resolvable:$true] %s28
      %34 = dma.hbm_to_vmem [thread:$0]  %s27, 6144, %s29, [#allocation6], 128, 128, 8
    $region9: #{tpu_custom_call.1} parent=1 // pred_fallthru
      _
    // Predicated region
    $region10: #{tpu_custom_call.1} parent=1 // pred_check
      _
    $region11: #{tpu_custom_call.1} parent=1 // pred_check_branch
      %36 = sbr.rel (0) target = $region13
    $region12: #{tpu_custom_call.1} parent=1 // pred_region
      %38 = vsyncadd [#allocation6], 0
      %s39 = sshll.u32 %s2, 4
      %s40 = int_to_ptr.hbm [resolvable:$true] %s39
      %s41 = sshll.u32 [#allocation7], 4
      %s42 = int_to_ptr.vmem [resolvable:$true] %s41
      %47 = dma.hbm_to_vmem [thread:$0]  %s40, 48, %s42, [#allocation6], 16, 16, 1
    $region13: #{tpu_custom_call.1} parent=1 // pred_fallthru
      _
    // Predicated region
    $region14: #{tpu_custom_call.1} parent=1 // pred_check
      _
    $region15: #{tpu_custom_call.1} parent=1 // pred_check_branch
      %49 = sbr.rel (0) target = $region17
    $region16: #{tpu_custom_call.1} parent=1 // pred_region
      %51 = dma.done [#allocation3], 128
    $region17: #{tpu_custom_call.1} parent=1 // pred_fallthru
      _
    // Predicated region
    $region18: #{tpu_custom_call.1} parent=1 // pred_check
      _
    $region19: #{tpu_custom_call.1} parent=1 // pred_check_branch
      %53 = sbr.rel (0) target = $region21
    $region20: #{tpu_custom_call.1} parent=1 // pred_region
      %55 = dma.done [#allocation6], 6144
    $region21: #{tpu_custom_call.1} parent=1 // pred_fallthru
      _
    // Predicated region
    $region22: #{tpu_custom_call.1} parent=1 // pred_check
      _
    $region23: #{tpu_custom_call.1} parent=1 // pred_check_branch
      %57 = sbr.rel (0) target = $region25
    $region24: #{tpu_custom_call.1} parent=1 // pred_region
      %59 = dma.done [#allocation6], 48
    $region25: #{tpu_custom_call.1} parent=1 // pred_fallthru
      _
    %v60 = vld [vmem:[#allocation2] sm:$0xff]
    %v61 = vld [vmem:[#allocation5] sm:$0xff]
    %v62 = vld [vmem:[#allocation5 + $0x8] sm:$0xff]
    %v63 = vld [vmem:[#allocation5 + $0x10] sm:$0xff]
    %v64 = vld [vmem:[#allocation5 + $0x18] sm:$0xff]
    %v65 = vld [vmem:[#allocation5 + $0x20] sm:$0xff]
    %v66 = vld [vmem:[#allocation5 + $0x28] sm:$0xff]
    %v67 = vld [vmem:[#allocation5 + $0x30] sm:$0xff]
    %v68 = vld [vmem:[#allocation5 + $0x38] sm:$0xff]
    %v69 = vld [vmem:[#allocation5 + $0x40] sm:$0xff]
    %v70 = vld [vmem:[#allocation5 + $0x48] sm:$0xff]
    %v71 = vld [vmem:[#allocation5 + $0x50] sm:$0xff]
    %v72 = vld [vmem:[#allocation5 + $0x58] sm:$0xff]
    %v73 = vld [vmem:[#allocation5 + $0x60] sm:$0xff]
    %v74 = vld [vmem:[#allocation5 + $0x68] sm:$0xff]
    %v75 = vld [vmem:[#allocation5 + $0x70] sm:$0xff]
    %v76 = vld [vmem:[#allocation5 + $0x78] sm:$0xff]
    %v77 = vld [vmem:[#allocation7] sm:$0x1]
    %v79 = vperm.slane %v77, 0
    %81 = vmatpush.msra.mxu0 %v76
    %82 = vmatpush.msra.mxu0 %v75
    %83 = vmatpush.msra.mxu0 %v74
    %84 = vmatpush.msra.mxu0 %v73
    %85 = vmatpush.msra.mxu0 %v72
    %86 = vmatpush.msra.mxu0 %v71
    %87 = vmatpush.msra.mxu0 %v70
    %88 = vmatpush.msra.mxu0 %v69
    %89 = vmatpush.msra.mxu0 %v68
    %90 = vmatpush.msra.mxu0 %v67
    %91 = vmatpush.msra.mxu0 %v66
    %92 = vmatpush.msra.mxu0 %v65
    %93 = vmatpush.msra.mxu0 %v64
    %94 = vmatpush.msra.mxu0 %v63
    %95 = vmatpush.msra.mxu0 %v62
    %96 = vmatpush.msra.mxu0 %v61
    %97 = vmatmul.f32.gmra.mxu0 %v60
    %v98 = vpop.f32.mrf.mxu0
    %v99 = vadd.f32 %v79, %v98
    %100 = vdwg.mxu0
    %v101 = vmax.f32 %v99, 0.0
    %s102 = scalar_lea.vmem [#allocation5], 128
    %v103 = vld [vmem:[%s102] sm:$0xff]
    %v104 = vld [vmem:[%s102 + $0x8] sm:$0xff]
    %v105 = vld [vmem:[%s102 + $0x10] sm:$0xff]
    %v106 = vld [vmem:[%s102 + $0x18] sm:$0xff]
    %v107 = vld [vmem:[%s102 + $0x20] sm:$0xff]
    %v108 = vld [vmem:[%s102 + $0x28] sm:$0xff]
    %v109 = vld [vmem:[%s102 + $0x30] sm:$0xff]
    %v110 = vld [vmem:[%s102 + $0x38] sm:$0xff]
    %v111 = vld [vmem:[%s102 + $0x40] sm:$0xff]
    %v112 = vld [vmem:[%s102 + $0x48] sm:$0xff]
    %v113 = vld [vmem:[%s102 + $0x50] sm:$0xff]
    %v114 = vld [vmem:[%s102 + $0x58] sm:$0xff]
    %v115 = vld [vmem:[%s102 + $0x60] sm:$0xff]
    %v116 = vld [vmem:[%s102 + $0x68] sm:$0xff]
    %v117 = vld [vmem:[%s102 + $0x70] sm:$0xff]
    %v118 = vld [vmem:[%s102 + $0x78] sm:$0xff]
    %s119 = scalar_lea.vmem [#allocation7], 1
    %v120 = vld [vmem:[%s119] sm:$0x1]
    %v122 = vperm.slane %v120, 0
    %124 = vmatpush.msra.mxu0 %v118
    %125 = vmatpush.msra.mxu0 %v117
    %126 = vmatpush.msra.mxu0 %v116
    %127 = vmatpush.msra.mxu0 %v115
    %128 = vmatpush.msra.mxu0 %v114
    %129 = vmatpush.msra.mxu0 %v113
    %130 = vmatpush.msra.mxu0 %v112
    %131 = vmatpush.msra.mxu0 %v111
    %132 = vmatpush.msra.mxu0 %v110
    %133 = vmatpush.msra.mxu0 %v109
    %134 = vmatpush.msra.mxu0 %v108
    %135 = vmatpush.msra.mxu0 %v107
    %136 = vmatpush.msra.mxu0 %v106
    %137 = vmatpush.msra.mxu0 %v105
    %138 = vmatpush.msra.mxu0 %v104
    %139 = vmatpush.msra.mxu0 %v103
    %140 = vmatmul.f32.gmra.mxu0 %v101
    %v141 = vpop.f32.mrf.mxu0
    %v142 = vadd.f32 %v122, %v141
    %143 = vdwg.mxu0
    %v144 = vmax.f32 %v142, 0.0
    %s145 = scalar_lea.vmem [#allocation5], 256
    %v146 = vld [vmem:[%s145] sm:$0xff]
    %v147 = vld [vmem:[%s145 + $0x8] sm:$0xff]
    %v148 = vld [vmem:[%s145 + $0x10] sm:$0xff]
    %v149 = vld [vmem:[%s145 + $0x18] sm:$0xff]
    %v150 = vld [vmem:[%s145 + $0x20] sm:$0xff]
    %v151 = vld [vmem:[%s145 + $0x28] sm:$0xff]
    %v152 = vld [vmem:[%s145 + $0x30] sm:$0xff]
    %v153 = vld [vmem:[%s145 + $0x38] sm:$0xff]
    %v154 = vld [vmem:[%s145 + $0x40] sm:$0xff]
    %v155 = vld [vmem:[%s145 + $0x48] sm:$0xff]
    %v156 = vld [vmem:[%s145 + $0x50] sm:$0xff]
    %v157 = vld [vmem:[%s145 + $0x58] sm:$0xff]
    %v158 = vld [vmem:[%s145 + $0x60] sm:$0xff]
    %v159 = vld [vmem:[%s145 + $0x68] sm:$0xff]
    %v160 = vld [vmem:[%s145 + $0x70] sm:$0xff]
    %v161 = vld [vmem:[%s145 + $0x78] sm:$0xff]
    %s162 = scalar_lea.vmem [#allocation7], 2
    %v163 = vld [vmem:[%s162] sm:$0x1]
    %v165 = vperm.slane %v163, 0
    %167 = vmatpush.msra.mxu0 %v161
    %168 = vmatpush.msra.mxu0 %v160
    %169 = vmatpush.msra.mxu0 %v159
    %170 = vmatpush.msra.mxu0 %v158
    %171 = vmatpush.msra.mxu0 %v157
    %172 = vmatpush.msra.mxu0 %v156
    %173 = vmatpush.msra.mxu0 %v155
    %174 = vmatpush.msra.mxu0 %v154
    %175 = vmatpush.msra.mxu0 %v153
    %176 = vmatpush.msra.mxu0 %v152
    %177 = vmatpush.msra.mxu0 %v151
    %178 = vmatpush.msra.mxu0 %v150
    %179 = vmatpush.msra.mxu0 %v149
    %180 = vmatpush.msra.mxu0 %v148
    %181 = vmatpush.msra.mxu0 %v147
    %182 = vmatpush.msra.mxu0 %v146
    %183 = vmatmul.f32.gmra.mxu0 %v144
    %v184 = vpop.f32.mrf.mxu0
    %v185 = vadd.f32 %v165, %v184
    %186 = vdwg.mxu0
    %187 = vmax.xlane.f32.xlu0 %v185
    %v188 = vpop.xlane.xlu0 %187
    %v189 = vsub.f32 %v185, %v188
    %v190 = vmul.f32 %v189, 1.442695
    %v191 = vpow.pop %v190
    %192 = vadd.xlane.f32.xlu0 %v191
    %v193 = vpop.xlane.xlu0 %192
    %v194 = vlog2.pop %v193
    %v195 = vmul.f32 %v194, 0.6931472
    %v196 = vsub.f32 %v189, %v195
    %197 = vst [vmem:[#allocation8] sm:$0xff] %v196
    // Predicated region
    $region26: #{tpu_custom_call.1} parent=1 // pred_check
      _
    $region27: #{tpu_custom_call.1} parent=1 // pred_check_branch
      %199 = sbr.rel (0) target = $region29
    $region28: #{tpu_custom_call.1} parent=1 // pred_region
      %201 = vsyncadd [#allocation4], 0
      %s203 = sshll.u32 [#allocation8], 4
      %s204 = int_to_ptr.vmem [resolvable:$true] %s203
      %s205 = sshll.u32 %s3, 4
      %s206 = int_to_ptr.hbm [resolvable:$true] %s205
      %208 = dma.vmem_to_hbm [thread:$0]  %s204, 128, %s206, [#allocation4]
    $region29: #{tpu_custom_call.1} parent=1 // pred_fallthru
      _
    // Predicated region
    $region30: #{tpu_custom_call.1} parent=1 // pred_check
      _
    $region31: #{tpu_custom_call.1} parent=1 // pred_check_branch
      %210 = sbr.rel (0) target = $region33
    $region32: #{tpu_custom_call.1} parent=1 // pred_region
      %212 = dma.done [#allocation4], 128
    $region33: #{tpu_custom_call.1} parent=1 // pred_fallthru
      _
    %213 = vsyncpa [#allocation3], 1
    %214 = vsyncpa [#allocation6], 1
    %215 = vsyncpa [#allocation4], 1

</llo_original>
